<compile_context>
chip_gen: v6e
topology: v6e:2x2x1
jax: 0.10.0
libtpu: 0.0.40
codegen_flags: <defaults>
</compile_context>

<pallas_src>
import functools

import jax
import jax.numpy as jnp
from jax.experimental import pallas as pl
from jax.experimental.pallas import tpu as pltpu

IN_DIM = 64
FEAT_DIM = 128
TAIL_DIM = 2 + 2                    # velocity (2) + intention (2)
OUT_DIM = FEAT_DIM + TAIL_DIM       # 132

# Batch tile: multiple of 8 (sublane). 2048 rows -> ~3.2 MiB of double-buffered
# VMEM traffic, comfortably inside the 32 MiB scoped default on v7x as well.
DEFAULT_TILE_B = 2048


def _fc_tanh_kernel(x_ref, w_ref, b_ref, feat_ref, tail_ref):
    # x_ref: [tb, 64], w_ref: [64, 132], b_ref: [1, 132] (f32)
    # feat_ref: [tb, 128], tail_ref: [tb, 4]
    y = jnp.dot(x_ref[...], w_ref[...], preferred_element_type=jnp.float32)
    y = jnp.tanh(y + b_ref[...])                     # bias add + tanh in f32
    feat_ref[...] = y[:, :FEAT_DIM].astype(feat_ref.dtype)   # lane-dense store
    tail_ref[...] = y[:, FEAT_DIM:].astype(tail_ref.dtype)   # tiny 4-lane tail


def prepare_params(weight, bias, io_dtype=jnp.float32):
    """Hoist per-call transpose/reshape: PyTorch [out,in] -> [in,out], bias -> [1,132]."""
    w_t = jnp.asarray(weight, io_dtype).T             # [64, 132]
    b2d = jnp.asarray(bias, jnp.float32).reshape(1, OUT_DIM)
    return w_t, b2d


def state_restore_net_forward(state, w_t, b2d, *, io_dtype=jnp.float32,
                              tile_b=DEFAULT_TILE_B):
    """Pallas equivalent of StateRestoreNet.forward.

    state : [..., 64]
    w_t   : [64, 132]  (pre-transposed, see prepare_params)
    b2d   : [1, 132]   float32
    Returns (feature [...,128], velocity [...,2], intention [...,2]).
    """
    orig_shape = state.shape
    assert orig_shape[-1] == IN_DIM
    x2d = state.reshape((-1, IN_DIM)).astype(io_dtype)
    batch = x2d.shape[0]

    # Pad batch to a multiple of the (8-aligned) tile so every grid step is full.
    padded = -(-batch // 8) * 8
    tile = min(tile_b, padded)
    padded = -(-padded // tile) * tile
    if padded != batch:
        x2d = jnp.pad(x2d, ((0, padded - batch), (0, 0)))
    grid = (padded // tile,)

    io_bytes = jnp.dtype(io_dtype).itemsize
    cost = pl.CostEstimate(
        flops=2 * padded * IN_DIM * OUT_DIM,
        transcendentals=padded * OUT_DIM,
        bytes_accessed=(padded * (IN_DIM + OUT_DIM)) * io_bytes
        + IN_DIM * OUT_DIM * io_bytes + OUT_DIM * 4,
    )

    feat, tail = pl.pallas_call(
        _fc_tanh_kernel,
        out_shape=(
            jax.ShapeDtypeStruct((padded, FEAT_DIM), io_dtype),
            jax.ShapeDtypeStruct((padded, TAIL_DIM), io_dtype),
        ),
        grid=grid,
        in_specs=[
            pl.BlockSpec((tile, IN_DIM), lambda i: (i, 0)),      # batch-tiled x
            pl.BlockSpec((IN_DIM, OUT_DIM), lambda i: (0, 0)),   # resident weight
            pl.BlockSpec((1, OUT_DIM), lambda i: (0, 0)),        # resident bias
        ],
        out_specs=(
            pl.BlockSpec((tile, FEAT_DIM), lambda i: (i, 0)),
            pl.BlockSpec((tile, TAIL_DIM), lambda i: (i, 0)),
        ),
        compiler_params=pltpu.CompilerParams(
            dimension_semantics=("parallel",),                   # megacore on v7x
        ),
        cost_estimate=cost,
    )(x2d, w_t, b2d)

    feat = feat[:batch].reshape(orig_shape[:-1] + (FEAT_DIM,))
    tail = tail[:batch].reshape(orig_shape[:-1] + (TAIL_DIM,))
    velocity = tail[..., :2]
    intention = tail[..., 2:]
    return feat, velocity, intention


def init_params(key):
    """Matches orthogonal_init(self.fc, gain=1.0): orthogonal weight, zero bias."""
    w_key, _ = jax.random.split(key)
    weight = jax.nn.initializers.orthogonal(scale=1.0)(
        w_key, (OUT_DIM, IN_DIM), jnp.float32
    )
    bias = jnp.zeros((OUT_DIM,), dtype=jnp.float32)
    return weight, bias


if __name__ == "__main__":
    key = jax.random.PRNGKey(0)
    k_param, k_input = jax.random.split(key)

    weight, bias = init_params(k_param)

    # Small shapes: leading dims are (batch, time); feature dim is fixed at 64.
    batch, time = 2, 8
    state = jax.random.normal(k_input, (batch, time, IN_DIM), dtype=jnp.float32)

    # f32 path (exact module semantics).
    w_t, b2d = prepare_params(weight, bias)
    feature, velocity, intention = state_restore_net_forward(state, w_t, b2d)
    jax.block_until_ready((feature, velocity, intention))

    ref = jnp.tanh(state @ weight.T + bias)
    assert feature.shape == (batch, time, FEAT_DIM)
    assert velocity.shape == (batch, time, 2)
    assert intention.shape == (batch, time, 2)
    assert jnp.allclose(feature, ref[..., :128], atol=1e-5)
    assert jnp.allclose(velocity, ref[..., 128:130], atol=1e-5)
    assert jnp.allclose(intention, ref[..., 130:132], atol=1e-5)

    # bf16-I/O path (bandwidth optimization; f32 accumulate/tanh inside kernel).
    w_t16, b2d16 = prepare_params(weight, bias, io_dtype=jnp.bfloat16)
    f16, v16, i16 = state_restore_net_forward(state, w_t16, b2d16,
                                              io_dtype=jnp.bfloat16)
    jax.block_until_ready((f16, v16, i16))
    assert jnp.allclose(f16.astype(jnp.float32), ref[..., :128], atol=3e-2)
    assert jnp.allclose(v16.astype(jnp.float32), ref[..., 128:130], atol=3e-2)
    assert jnp.allclose(i16.astype(jnp.float32), ref[..., 130:132], atol=3e-2)

    print("KERNEL_OK")
</pallas_src>

<mosaic_0001>
module attributes {stable_mosaic.version = 11 : i64} {
  func.func @_fc_tanh_kernel(%arg0: i32, %arg1: memref<16x64xf32, #tpu.memory_space<vmem>>, %arg2: memref<64x132xf32, #tpu.memory_space<vmem>>, %arg3: memref<1x132xf32, #tpu.memory_space<vmem>>, %arg4: memref<16x128xf32, #tpu.memory_space<vmem>>, %arg5: memref<16x4xf32, #tpu.memory_space<vmem>>) attributes {dimension_semantics = [#tpu.dimension_semantics<parallel>], iteration_bounds = array<i64: 1>, scalar_prefetch = 0 : i64, scratch_operands = 0 : i64, tpu.core_type = #tpu.core_type<tc>, window_params = [{transform_indices = @transform_0, window_bounds = array<i64: 16, 64>}, {pipeline_mode = #tpu.pipeline_mode<synchronous>, transform_indices = @transform_1, window_bounds = array<i64: 64, 132>}, {pipeline_mode = #tpu.pipeline_mode<synchronous>, transform_indices = @transform_2, window_bounds = array<i64: 1, 132>}, {transform_indices = @transform_3, window_bounds = array<i64: 16, 128>}, {transform_indices = @transform_4, window_bounds = array<i64: 16, 4>}]} {
    %c0 = arith.constant 0 : index
    %c0_0 = arith.constant 0 : index
    %0 = vector.load %arg1[%c0, %c0_0] : memref<16x64xf32, #tpu.memory_space<vmem>>, vector<16x64xf32>
    %c0_1 = arith.constant 0 : index
    %c0_2 = arith.constant 0 : index
    %1 = vector.load %arg2[%c0_1, %c0_2] : memref<64x132xf32, #tpu.memory_space<vmem>>, vector<64x132xf32>
    %cst = arith.constant dense<0.000000e+00> : vector<16x132xf32>
    %2 = tpu.matmul %0, %1, %cst {dimension_numbers = #tpu.dot_dimension_numbers<[1], [0], [0], [1], [0, 0, 1, 1], [], []>} : vector<16x64xf32>, vector<64x132xf32>, vector<16x132xf32> -> vector<16x132xf32>
    %c0_3 = arith.constant 0 : index
    %c0_4 = arith.constant 0 : index
    %3 = vector.load %arg3[%c0_3, %c0_4] : memref<1x132xf32, #tpu.memory_space<vmem>>, vector<1x132xf32>
    %4 = vector.broadcast %3 : vector<1x132xf32> to vector<16x132xf32>
    %5 = arith.addf %2, %4 : vector<16x132xf32>
    %6 = math.tanh %5 : vector<16x132xf32>
    %7 = vector.extract_strided_slice %6 {offsets = [0, 0], sizes = [16, 128], strides = [1, 1]} : vector<16x132xf32> to vector<16x128xf32>
    %c0_5 = arith.constant 0 : index
    %c0_6 = arith.constant 0 : index
    %8 = vector.load %arg4[%c0_5, %c0_6] : memref<16x128xf32, #tpu.memory_space<vmem>>, vector<16x128xf32>
    tpu.vector_store %arg4[%c0_5, %c0_6], %7 {strides = array<i32>} : memref<16x128xf32, #tpu.memory_space<vmem>>, vector<16x128xf32>,
    %9 = vector.extract_strided_slice %6 {offsets = [0, 128], sizes = [16, 4], strides = [1, 1]} : vector<16x132xf32> to vector<16x4xf32>
    %c0_7 = arith.constant 0 : index
    %c0_8 = arith.constant 0 : index
    %10 = vector.load %arg5[%c0_7, %c0_8] : memref<16x4xf32, #tpu.memory_space<vmem>>, vector<16x4xf32>
    tpu.vector_store %arg5[%c0_7, %c0_8], %9 {strides = array<i32>} : memref<16x4xf32, #tpu.memory_space<vmem>>, vector<16x4xf32>,
    return
  }
  func.func @transform_0(%arg0: i32) -> (i32, i32) {
    %c0_i32 = arith.constant 0 : i32
    %c0_i32_0 = arith.constant 0 : i32
    return %arg0, %c0_i32 : i32, i32
  }
  func.func @transform_1(%arg0: i32) -> (i32, i32) {
    %c0_i32 = arith.constant 0 : i32
    %c0_i32_0 = arith.constant 0 : i32
    %c0_i32_1 = arith.constant 0 : i32
    return %c0_i32, %c0_i32_0 : i32, i32
  }
  func.func @transform_2(%arg0: i32) -> (i32, i32) {
    %c0_i32 = arith.constant 0 : i32
    %c0_i32_0 = arith.constant 0 : i32
    %c0_i32_1 = arith.constant 0 : i32
    return %c0_i32, %c0_i32_0 : i32, i32
  }
  func.func @transform_3(%arg0: i32) -> (i32, i32) {
    %c0_i32 = arith.constant 0 : i32
    %c0_i32_0 = arith.constant 0 : i32
    return %arg0, %c0_i32 : i32, i32
  }
  func.func @transform_4(%arg0: i32) -> (i32, i32) {
    %c0_i32 = arith.constant 0 : i32
    %c0_i32_0 = arith.constant 0 : i32
    return %arg0, %c0_i32 : i32, i32
  }
}

</mosaic_0001>

<llo_original>
// kernel: tpu_custom_call.1
$region0: #{tpu_custom_call.1}
  #allocation0 [shape = 'u32[]', space=smem, size = 0x4, offset = 0x4, fixed_abs, tag = 'smem constant byte address 0x4 - core index']
  #allocation1 [shape = 'u32[144,128]{1,0:T(1,128)}', space=vmem, size = 0x12000, scoped, tag = 'internal scratch']
  %s0 = inlined_call_operand.hbm [shape: f32[16,64], index: 0, kind: input, shape index: {}]
  %s1 = inlined_call_operand.hbm [shape: f32[64,132], index: 1, kind: input, shape index: {}]
  %s2 = inlined_call_operand.vmem [shape: f32[1,132], index: 2, kind: input, shape index: {}]
  %s3 = inlined_call_operand.hbm [shape: f32[16,128], index: 3, kind: output, shape index: {0}]
  %s4 = inlined_call_operand.vmem [shape: f32[16,4], index: 4, kind: output, shape index: {1}]
  %5 = xla_tuple %s3, %s4
  %s6 = sld [smem:[#allocation0]]
  $region38: #{tpu_custom_call.1} parent=0
    _
  %s8 = ssub.s32 1, %s6
  %s9 = scalar_select 0, %s8, %s6
  $region1: #{tpu_custom_call.1} parent=0
    #allocation2 [shape = 'u8[8192]{0}', space=vmem, size = 0x2000, scoped, tag = 'input window, operand 0, single buffered']
    #allocation3 [shape = 's32[1]{0}', space=sflag, size = 0x4, scoped, tag = 'scoped memory for tpu_custom_call.1']
    #allocation4 [shape = 's32[1]{0}', space=sflag, size = 0x4, scoped, tag = 'scoped memory for tpu_custom_call.1']
    #allocation5 [shape = 'u8[65536]{0}', space=vmem, size = 0x10000, scoped, tag = 'input window, operand 1, single buffered']
    #allocation6 [shape = 's32[1]{0}', space=sflag, size = 0x4, scoped, tag = 'scoped memory for tpu_custom_call.1']
    #allocation7 [shape = 'u8[8192]{0}', space=vmem, size = 0x2000, scoped, tag = 'output window, operand 0, single buffered']
    %10 = vsyncpa [#allocation3], 0
    %11 = vsyncpa [#allocation6], 0
    %12 = vsyncpa [#allocation4], 0
    // Predicated region
    $region2: #{tpu_custom_call.1} parent=1 // pred_check
      _
    $region3: #{tpu_custom_call.1} parent=1 // pred_check_branch
      %14 = sbr.rel (0) target = $region5
    $region4: #{tpu_custom_call.1} parent=1 // pred_region
      %s16 = ssub.s32 256, 256
      %17 = vsyncadd [#allocation3], %s16
      %s18 = sshll.u32 [#allocation2], 4
      %s19 = int_to_ptr.vmem [resolvable:$true] %s18
      %24 = dma.hbm_to_vmem [thread:$0]  %s0, 256, %s19, [#allocation3], 128, 128, 8
    $region5: #{tpu_custom_call.1} parent=1 // pred_fallthru
      _
    // Predicated region
    $region6: #{tpu_custom_call.1} parent=1 // pred_check
      _
    $region7: #{tpu_custom_call.1} parent=1 // pred_check_branch
      %26 = sbr.rel (0) target = $region9
    $region8: #{tpu_custom_call.1} parent=1 // pred_region
      %s28 = ssub.s32 2048, 2048
      %29 = vsyncadd [#allocation6], %s28
      %s30 = sshll.u32 [#allocation5], 4
      %s31 = int_to_ptr.vmem [resolvable:$true] %s30
      %36 = dma.hbm_to_vmem [thread:$0]  %s1, 2048, %s31, [#allocation6], 256, 256, 16
    $region9: #{tpu_custom_call.1} parent=1 // pred_fallthru
      _
    // Predicated region
    $region10: #{tpu_custom_call.1} parent=1 // pred_check
      _
    $region11: #{tpu_custom_call.1} parent=1 // pred_check_branch
      %38 = sbr.rel (0) target = $region13
    $region12: #{tpu_custom_call.1} parent=1 // pred_region
      _
    $region13: #{tpu_custom_call.1} parent=1 // pred_fallthru
      _
    // Predicated region
    $region14: #{tpu_custom_call.1} parent=1 // pred_check
      _
    $region15: #{tpu_custom_call.1} parent=1 // pred_check_branch
      %40 = sbr.rel (0) target = $region17
    $region16: #{tpu_custom_call.1} parent=1 // pred_region
      %41 = dma.done [#allocation3], 256
    $region17: #{tpu_custom_call.1} parent=1 // pred_fallthru
      _
    // Predicated region
    $region18: #{tpu_custom_call.1} parent=1 // pred_check
      _
    $region19: #{tpu_custom_call.1} parent=1 // pred_check_branch
      %43 = sbr.rel (0) target = $region21
    $region20: #{tpu_custom_call.1} parent=1 // pred_region
      %44 = dma.done [#allocation6], 2048
    $region21: #{tpu_custom_call.1} parent=1 // pred_fallthru
      _
    %v45 = vld [vmem:[#allocation2] sm:$0xff]
    %v46 = vld [vmem:[#allocation2 + $0x8] sm:$0xff]
    %v47 = vld [vmem:[#allocation5] sm:$0xff]
    %v48 = vld [vmem:[#allocation5 + $0x8] sm:$0xff]
    %v49 = vld [vmem:[#allocation5 + $0x10] sm:$0xff]
    %v50 = vld [vmem:[#allocation5 + $0x18] sm:$0xff]
    %v51 = vld [vmem:[#allocation5 + $0x20] sm:$0xff]
    %v52 = vld [vmem:[#allocation5 + $0x28] sm:$0xff]
    %v53 = vld [vmem:[#allocation5 + $0x30] sm:$0xff]
    %v54 = vld [vmem:[#allocation5 + $0x38] sm:$0xff]
    %v55 = vld [vmem:[#allocation5 + $0x40] sm:$0xff]
    %v56 = vld [vmem:[#allocation5 + $0x48] sm:$0xff]
    %v57 = vld [vmem:[#allocation5 + $0x50] sm:$0xff]
    %v58 = vld [vmem:[#allocation5 + $0x58] sm:$0xff]
    %v59 = vld [vmem:[#allocation5 + $0x60] sm:$0xff]
    %v60 = vld [vmem:[#allocation5 + $0x68] sm:$0xff]
    %v61 = vld [vmem:[#allocation5 + $0x70] sm:$0xff]
    %v62 = vld [vmem:[#allocation5 + $0x78] sm:$0xff]
    %v63 = vld [vmem:[%s2] sm:$0x3]
    %v65 = vlaneseq
    %v66 = vshrl.u32 %v65, 7
    %v67 = vsub.s32 0, %v66
    %v68 = vrot.slane %v63, %v67
    %v69 = vlaneseq
    %v70 = vshrl.u32 %v69, 7
    %v71 = vsub.s32 1, %v70
    %v72 = vrot.slane %v63, %v71
    %vm75 = vcmask 523264
    %v77 = vsel %vm75, %v45, 0
    %v80 = vsel %vm75, %v46, 0
    %82 = vmatprep.subr.mxu0 0.0
    %83 = vmatpush1.msra.mxu0 0.0
    %84 = vmatprep.subr.mxu0 0.0
    %85 = vmatpush1.msra.mxu0 0.0
    %86 = vmatprep.subr.mxu0 0.0
    %87 = vmatpush1.msra.mxu0 0.0
    %88 = vmatprep.subr.mxu0 0.0
    %89 = vmatpush1.msra.mxu0 0.0
    %90 = vmatprep.subr.mxu0 0.0
    %91 = vmatpush1.msra.mxu0 0.0
    %92 = vmatprep.subr.mxu0 0.0
    %93 = vmatpush1.msra.mxu0 0.0
    %94 = vmatprep.subr.mxu0 0.0
    %95 = vmatpush1.msra.mxu0 0.0
    %96 = vmatprep.subr.mxu0 0.0
    %97 = vmatpush1.msra.mxu0 0.0
    %98 = vmatprep.subr.mxu0 %v62
    %99 = vmatpush1.msra.mxu0 %v61
    %100 = vmatprep.subr.mxu0 %v60
    %101 = vmatpush1.msra.mxu0 %v59
    %102 = vmatprep.subr.mxu0 %v58
    %103 = vmatpush1.msra.mxu0 %v57
    %104 = vmatprep.subr.mxu0 %v56
    %105 = vmatpush1.msra.mxu0 %v55
    %106 = vmatprep.subr.mxu0 %v54
    %107 = vmatpush1.msra.mxu0 %v53
    %108 = vmatprep.subr.mxu0 %v52
    %109 = vmatpush1.msra.mxu0 %v51
    %110 = vmatprep.subr.mxu0 %v50
    %111 = vmatpush1.msra.mxu0 %v49
    %112 = vmatprep.subr.mxu0 %v48
    %113 = vmatpush1.msra.mxu0 %v47
    %114 = vmatprep.subr.mxu0 0.0
    %115 = vmatpush2.msra.mxu0 0.0
    %116 = vmatprep.subr.mxu0 0.0
    %117 = vmatpush2.msra.mxu0 0.0
    %118 = vmatprep.subr.mxu0 0.0
    %119 = vmatpush2.msra.mxu0 0.0
    %120 = vmatprep.subr.mxu0 0.0
    %121 = vmatpush2.msra.mxu0 0.0
    %122 = vmatprep.subr.mxu0 0.0
    %123 = vmatpush2.msra.mxu0 0.0
    %124 = vmatprep.subr.mxu0 0.0
    %125 = vmatpush2.msra.mxu0 0.0
    %126 = vmatprep.subr.mxu0 0.0
    %127 = vmatpush2.msra.mxu0 0.0
    %128 = vmatprep.subr.mxu0 0.0
    %129 = vmatpush2.msra.mxu0 0.0
    %130 = vmatprep.subr.mxu0 0.0
    %131 = vmatpush2.msra.mxu0 0.0
    %132 = vmatprep.subr.mxu0 0.0
    %133 = vmatpush2.msra.mxu0 0.0
    %134 = vmatprep.subr.mxu0 0.0
    %135 = vmatpush2.msra.mxu0 0.0
    %136 = vmatprep.subr.mxu0 0.0
    %137 = vmatpush2.msra.mxu0 0.0
    %138 = vmatprep.subr.mxu0 0.0
    %139 = vmatpush2.msra.mxu0 0.0
    %140 = vmatprep.subr.mxu0 0.0
    %141 = vmatpush2.msra.mxu0 0.0
    %142 = vmatprep.subr.mxu0 0.0
    %143 = vmatpush2.msra.mxu0 0.0
    %144 = vmatprep.subr.mxu0 0.0
    %145 = vmatpush2.msra.mxu0 0.0
    %146 = vmatprep.mubr.f32.mxu0 0.0
    %147 = vmatmul.mubr.f32.gmra.mxu0 %v77
    %v148 = vpop.f32.mrf.mxu0
    %v149 = vadd.f32 %v68, %v148
    %v150 = vpop.f32.mrf.mxu0
    %v151 = vadd.f32 %v72, %v150
    %152 = vmatprep.mubr.f32.mxu0 0.0
    %153 = vmatmul.mubr.f32.gmra.mxu0 %v80
    %v154 = vpop.f32.mrf.mxu0
    %v155 = vadd.f32 %v68, %v154
    %v156 = vpop.f32.mrf.mxu0
    %v157 = vadd.f32 %v72, %v156
    %158 = vdwg.mxu0
    %v159 = vtanh.pop %v149
    %v160 = vtanh.pop %v151
    %v161 = vtanh.pop %v155
    %v162 = vtanh.pop %v157
    %163 = vst [vmem:[#allocation7] sm:$0xff] %v159
    %164 = vst [vmem:[#allocation7 + $0x8] sm:$0xff] %v161
    %vm165 = vcmask 31744
    %166 = vst.msk [vmem:[%s4] sm:$0xff] %vm165, %v160
    %167 = vst.msk [vmem:[%s4 + $0x8] sm:$0xff] %vm165, %v162
    // Predicated region
    $region22: #{tpu_custom_call.1} parent=1 // pred_check
      _
    $region23: #{tpu_custom_call.1} parent=1 // pred_check_branch
      %169 = sbr.rel (0) target = $region25
    $region24: #{tpu_custom_call.1} parent=1 // pred_region
      %s171 = ssub.s32 256, 256
      %172 = vsyncadd [#allocation4], %s171
      %s173 = sshll.u32 [#allocation7], 4
      %s174 = int_to_ptr.vmem [resolvable:$true] %s173
      %179 = dma.vmem_to_hbm [thread:$0]  %s174, 256, %s3, [#allocation4], 128, 128, 8
    $region25: #{tpu_custom_call.1} parent=1 // pred_fallthru
      _
    // Predicated region
    $region26: #{tpu_custom_call.1} parent=1 // pred_check
      _
    $region27: #{tpu_custom_call.1} parent=1 // pred_check_branch
      %181 = sbr.rel (0) target = $region29
    $region28: #{tpu_custom_call.1} parent=1 // pred_region
      _
    $region29: #{tpu_custom_call.1} parent=1 // pred_fallthru
      _
    // Predicated region
    $region30: #{tpu_custom_call.1} parent=1 // pred_check
      _
    $region31: #{tpu_custom_call.1} parent=1 // pred_check_branch
      %183 = sbr.rel (0) target = $region33
    $region32: #{tpu_custom_call.1} parent=1 // pred_region
      %184 = dma.done [#allocation4], 256
    $region33: #{tpu_custom_call.1} parent=1 // pred_fallthru
      _
    // Predicated region
    $region34: #{tpu_custom_call.1} parent=1 // pred_check
      _
    $region35: #{tpu_custom_call.1} parent=1 // pred_check_branch
      %186 = sbr.rel (0) target = $region37
    $region36: #{tpu_custom_call.1} parent=1 // pred_region
      _
    $region37: #{tpu_custom_call.1} parent=1 // pred_fallthru
      _
    %187 = vsyncpa [#allocation3], 1
    %188 = vsyncpa [#allocation6], 1
    %189 = vsyncpa [#allocation4], 1

</llo_original>
